<compile_context>
chip_gen: v7x
topology: tpu7x:2x2x1
jax: 0.10.0
libtpu: 0.0.40
codegen_flags: <defaults>
</compile_context>

<pallas_src>
import jax
import jax.numpy as jnp
from jax.experimental import pallas as pl
from jax.experimental.pallas import tpu as pltpu


def _make_kernel(has_mask):
    def kernel(*refs):
        if has_mask:
            x_ref, mask_ref, w1_ref, b1_ref, w2_ref, b2_ref, out_ref = refs
        else:
            x_ref, w1_ref, b1_ref, w2_ref, b2_ref, out_ref = refs
            mask_ref = None

        tb, s, d = x_ref.shape

        x = x_ref[...]                                        # (TB, S, D), stream dtype

        # First projection: one MXU matmul over all TB*S rows (Mosaic folds the
        # leading dims); f32 accumulation so tanh/exp run in f32 on every chip.
        e = jnp.tanh(
            jnp.einsum("bsd,dh->bsh", x, w1_ref[...],
                       preferred_element_type=jnp.float32)
            + b1_ref[...]
        )                                                     # (TB, S, H) f32

        # Second projection (output width 1): VPU multiply + lane reduce
        # (no 1-column MXU matmul, no result-FIFO pop).
        logits = jnp.sum(e * w2_ref[...], axis=-1) + b2_ref[0, 0]   # (TB, S)

        # exp on unshifted logits, matching the PyTorch reference exactly.
        # TODO(synk): reference applies no max-subtraction before exp; kept
        # as-is for exact semantics even though very large logits can overflow.
        alpha = jnp.exp(logits)                               # (TB, S) f32
        if mask_ref is not None:
            alpha = alpha * mask_ref[...].reshape(tb, s)

        denom = jnp.sum(alpha, axis=-1, keepdims=True) + 1e-8
        alpha = alpha / denom                                 # exact divide (tiny)

        # Weighted pooling: contract the candidate axis directly -> (TB, D),
        # already in output orientation (no transposes).
        pooled = jnp.sum(x * alpha[:, :, None], axis=1)       # (TB, D) f32
        out_ref[...] = pooled.astype(out_ref.dtype)

    return kernel


def _vmem_capacity_bytes():
    try:
        return int(pltpu.get_tpu_info().vmem_capacity_bytes)
    except Exception:
        return 64 * 1024 * 1024   # conservative fallback (v7x per-TC size)


def _round_up(x, m):
    return -(-x // m) * m


def _pick_block_b(B, S, D, H, x_bytes, out_bytes, has_mask, max_block_b):
    """VMEM- and generation-aware batch tile + vmem_limit_bytes for the call."""
    vmem = _vmem_capacity_bytes()
    budget = int(vmem * 0.72)   # ~46 MiB on v7x (64 MiB/TC), ~92 MiB on v5e/v6e

    h_pad = _round_up(H, 128)
    d_pad = _round_up(D, 128)
    s_pad = _round_up(S, 8)

    # Per-batch-row VMEM cost: double-buffered x / mask / out blocks plus the
    # (tb, S, H) f32 temporaries of the first projection (e and activations).
    per_row = (2 * s_pad * d_pad * x_bytes            # x block (double-buffered)
               + 3 * s_pad * h_pad * 4                # e / activation f32 temporaries
               + 2 * d_pad * out_bytes                # out block (double-buffered)
               + (2 * s_pad * 4 if has_mask else 0))  # mask block
    fixed = 2 * d_pad * h_pad * 4 + 4 * h_pad * 4     # w1, b1, w2 (constant index maps)

    tb_vmem = max(1, (budget - fixed) // per_row)

    # DMA-efficiency floor: keep per-step x DMAs around >= ~1 MiB when possible.
    tb_dma = -(-(1 << 20) // max(1, S * D * x_bytes))
    # Pipeline-overlap target: >= ~8 grid steps (>= 4 per TensorCore after v7x
    # megacore sharding); extra steps on single-TC chips only cost ~0.35 us each.
    tb_steps = -(-B // 8)

    tb = min(tb_vmem, max_block_b, max(tb_steps, tb_dma))
    tb = max(1, min(tb, B))
    if tb < B:
        # Sublane-dense (unmasked) output stores: tb must be a multiple of 8
        # unless a single block covers the whole batch.
        tb = min(B, max(8, (tb // 8) * 8))
    # TODO(synk): for very long S (tb_vmem < 8), add a second "arbitrary" grid
    # axis over S with flash-style running (sum_exp, sum_exp*x) accumulators so
    # the batch tile decouples from S instead of overshooting the budget.

    vmem_limit = min(vmem, budget + (8 << 20))
    return tb, vmem_limit


def additive_attention(x, w1, b1, w2, b2, attn_mask=None, *,
                       stream_dtype=None, max_block_b=512):
    """x: (B, S, D); w1: (D, H); b1: (1, H) or (H,); w2: (H, 1) or (H,);
    b2: scalar-like; attn_mask: (B, S) or None.  Returns (B, D) in x.dtype.

    stream_dtype: optional dtype (e.g. jnp.bfloat16) used to stream x and w1
    through HBM (recommended on v6e/v7x for ~2x effective bandwidth); all
    tanh/exp/softmax/pooling math stays f32 regardless.
    """
    B, S, D = x.shape
    H = w1.shape[-1]
    out_dtype = x.dtype

    if stream_dtype is not None:
        x = x.astype(stream_dtype)
        w1 = w1.astype(stream_dtype)

    x_bytes = jnp.dtype(x.dtype).itemsize
    out_bytes = jnp.dtype(out_dtype).itemsize
    tb, vmem_limit = _pick_block_b(B, S, D, H, x_bytes, out_bytes,
                                   attn_mask is not None, max_block_b)
    grid = (pl.cdiv(B, tb),)   # ragged tail handled by masked partial blocks

    b1_row = jnp.reshape(b1, (1, H)).astype(jnp.float32)
    w2_row = jnp.reshape(w2, (1, H)).astype(jnp.float32)
    b2_s = jnp.reshape(b2, (1, 1)).astype(jnp.float32)

    x_spec = pl.BlockSpec((tb, S, D), lambda i: (i, 0, 0))
    w1_spec = pl.BlockSpec((D, H), lambda i: (0, 0))
    b1_spec = pl.BlockSpec((1, H), lambda i: (0, 0))
    w2_spec = pl.BlockSpec((1, H), lambda i: (0, 0))
    b2_spec = pl.BlockSpec(memory_space=pltpu.MemorySpace.SMEM)
    # Lane/sublane-dense 2-D output: (tb, D) blocks of a (B, D) array (tb is a
    # multiple of 8 or == B), so writeback is one dense slab per step.
    out_spec = pl.BlockSpec((tb, D), lambda i: (i, 0))
    # TODO(synk): when D < 128, pack k batch rows into the lane axis
    # ((B//k, S, k*D) in the wrapper) to make the x stream fully lane-dense.

    if attn_mask is None:
        kernel = _make_kernel(has_mask=False)
        in_specs = [x_spec, w1_spec, b1_spec, w2_spec, b2_spec]
        args = (x, w1, b1_row, w2_row, b2_s)
    else:
        mask = jnp.reshape(attn_mask, (B, 1, S)).astype(jnp.float32)
        mask_spec = pl.BlockSpec((tb, 1, S), lambda i: (i, 0, 0))
        kernel = _make_kernel(has_mask=True)
        in_specs = [x_spec, mask_spec, w1_spec, b1_spec, w2_spec, b2_spec]
        args = (x, mask, w1, b1_row, w2_row, b2_s)

    return pl.pallas_call(
        kernel,
        out_shape=jax.ShapeDtypeStruct((B, D), out_dtype),
        grid_spec=pltpu.PrefetchScalarGridSpec(
            num_scalar_prefetch=0,
            grid=grid,
            in_specs=in_specs,
            out_specs=out_spec,
        ),
        compiler_params=pltpu.CompilerParams(
            dimension_semantics=("parallel",),
            vmem_limit_bytes=int(vmem_limit),
        ),
    )(*args)


def _reference(x, w1, b1, w2, b2, attn_mask=None):
    e = jnp.tanh(x @ w1 + b1)                    # (B, S, H)
    alpha = jnp.exp(e @ w2 + b2[0, 0])           # (B, S, 1)
    if attn_mask is not None:
        alpha = alpha * attn_mask[..., None]
    alpha = alpha / (jnp.sum(alpha, axis=1, keepdims=True) + 1e-8)
    out = jnp.einsum("bsd,bsk->bdk", x, alpha)   # (B, D, 1)
    return out.reshape(x.shape[0], -1)


if __name__ == "__main__":
    # Shapes consistent with the module: batch=2, candidate_size=8, d_h=32,
    # hidden_size=200 (module default).
    B, S, D, H = 2, 8, 32, 200

    key = jax.random.PRNGKey(0)
    kx, km, k1, k2, k3, k4 = jax.random.split(key, 6)

    x = jax.random.normal(kx, (B, S, D), dtype=jnp.float32)
    attn_mask = (jax.random.uniform(km, (B, S)) > 0.2).astype(jnp.float32)

    bound1 = 1.0 / (D ** 0.5)
    w1 = jax.random.uniform(k1, (D, H), minval=-bound1, maxval=bound1, dtype=jnp.float32)
    b1 = jax.random.uniform(k2, (1, H), minval=-bound1, maxval=bound1, dtype=jnp.float32)
    bound2 = 1.0 / (H ** 0.5)
    w2 = jax.random.uniform(k3, (H, 1), minval=-bound2, maxval=bound2, dtype=jnp.float32)
    b2 = jax.random.uniform(k4, (1, 1), minval=-bound2, maxval=bound2, dtype=jnp.float32)

    # f32 path (default): exact-semantics check.
    out_masked = jax.block_until_ready(additive_attention(x, w1, b1, w2, b2, attn_mask))
    out_nomask = jax.block_until_ready(additive_attention(x, w1, b1, w2, b2, None))
    ref_masked = _reference(x, w1, b1, w2, b2, attn_mask)
    ref_nomask = _reference(x, w1, b1, w2, b2, None)
    assert out_masked.shape == (B, D), out_masked.shape
    assert out_nomask.shape == (B, D), out_nomask.shape
    assert jnp.allclose(out_masked, ref_masked, atol=1e-4, rtol=1e-4), "masked mismatch"
    assert jnp.allclose(out_nomask, ref_nomask, atol=1e-4, rtol=1e-4), "unmasked mismatch"

    # bf16 streaming path (recommended on v6e/v7x): compare against a reference
    # fed the same bf16-rounded x/w1 (MXU bf16 products are exact in f32 acc).
    out_bf16 = jax.block_until_ready(
        additive_attention(x, w1, b1, w2, b2, attn_mask, stream_dtype=jnp.bfloat16))
    ref_bf16 = _reference(x.astype(jnp.bfloat16).astype(jnp.float32),
                          w1.astype(jnp.bfloat16).astype(jnp.float32),
                          b1, w2, b2, attn_mask)
    assert jnp.allclose(out_bf16, ref_bf16, atol=5e-3, rtol=5e-3), "bf16 stream mismatch"

    # Ragged-tail path: B not a multiple of the batch tile (tile forced to 8).
    B2 = 10
    x2 = jax.random.normal(jax.random.PRNGKey(1), (B2, S, D), dtype=jnp.float32)
    mask2 = (jax.random.uniform(jax.random.PRNGKey(2), (B2, S)) > 0.2).astype(jnp.float32)
    out2 = jax.block_until_ready(
        additive_attention(x2, w1, b1, w2, b2, mask2, max_block_b=8))
    ref2 = _reference(x2, w1, b1, w2, b2, mask2)
    assert out2.shape == (B2, D), out2.shape
    assert jnp.allclose(out2, ref2, atol=1e-4, rtol=1e-4), "ragged-tail mismatch"

    print("KERNEL_OK")
</pallas_src>

<mosaic_0001>
module attributes {stable_mosaic.version = 11 : i64} {
  func.func @kernel(%arg0: i32, %arg1: memref<2x8x32xf32, #tpu.memory_space<vmem>>, %arg2: memref<2x1x8xf32, #tpu.memory_space<vmem>>, %arg3: memref<32x200xf32, #tpu.memory_space<vmem>>, %arg4: memref<1x200xf32, #tpu.memory_space<vmem>>, %arg5: memref<1x200xf32, #tpu.memory_space<vmem>>, %arg6: memref<1x1xf32, #tpu.memory_space<smem>>, %arg7: memref<2x32xf32, #tpu.memory_space<vmem>>) attributes {dimension_semantics = [#tpu.dimension_semantics<parallel>], iteration_bounds = array<i64: 1>, scalar_prefetch = 0 : i64, scratch_operands = 0 : i64, tpu.core_type = #tpu.core_type<tc>, window_params = [{transform_indices = @transform_0, window_bounds = array<i64: 2, 8, 32>}, {transform_indices = @transform_1, window_bounds = array<i64: 2, 1, 8>}, {pipeline_mode = #tpu.pipeline_mode<synchronous>, transform_indices = @transform_2, window_bounds = array<i64: 32, 200>}, {pipeline_mode = #tpu.pipeline_mode<synchronous>, transform_indices = @transform_3, window_bounds = array<i64: 1, 200>}, {pipeline_mode = #tpu.pipeline_mode<synchronous>, transform_indices = @transform_4, window_bounds = array<i64: 1, 200>}, {transform_indices = @transform_5, window_bounds = array<i64: 1, 1>}, {transform_indices = @transform_6, window_bounds = array<i64: 2, 32>}]} {
    %c0 = arith.constant 0 : index
    %c0_0 = arith.constant 0 : index
    %c0_1 = arith.constant 0 : index
    %0 = vector.load %arg1[%c0, %c0_0, %c0_1] : memref<2x8x32xf32, #tpu.memory_space<vmem>>, vector<2x8x32xf32>
    %c0_2 = arith.constant 0 : index
    %c0_3 = arith.constant 0 : index
    %1 = vector.load %arg3[%c0_2, %c0_3] : memref<32x200xf32, #tpu.memory_space<vmem>>, vector<32x200xf32>
    "tpu.trace_start"() <{level = 10 : i32, message = "bsd,dh->bsh"}> : () -> ()
    %cst = arith.constant dense<0.000000e+00> : vector<2x8x200xf32>
    %2 = tpu.matmul %0, %1, %cst {dimension_numbers = #tpu.dot_dimension_numbers<[2], [0], [0, 1], [1], [0, 0, 0, 1, 1, 1], [], []>} : vector<2x8x32xf32>, vector<32x200xf32>, vector<2x8x200xf32> -> vector<2x8x200xf32>
    "tpu.trace_stop"() : () -> ()
    %c0_4 = arith.constant 0 : index
    %c0_5 = arith.constant 0 : index
    %3 = vector.load %arg4[%c0_4, %c0_5] : memref<1x200xf32, #tpu.memory_space<vmem>>, vector<1x200xf32>
    %4 = vector.shape_cast %3 : vector<1x200xf32> to vector<1x1x200xf32>
    %5 = vector.broadcast %4 : vector<1x1x200xf32> to vector<2x8x200xf32>
    %6 = arith.addf %2, %5 : vector<2x8x200xf32>
    %7 = math.tanh %6 : vector<2x8x200xf32>
    %c0_6 = arith.constant 0 : index
    %c0_7 = arith.constant 0 : index
    %8 = vector.load %arg5[%c0_6, %c0_7] : memref<1x200xf32, #tpu.memory_space<vmem>>, vector<1x200xf32>
    %9 = vector.shape_cast %8 : vector<1x200xf32> to vector<1x1x200xf32>
    %10 = vector.broadcast %9 : vector<1x1x200xf32> to vector<2x8x200xf32>
    %11 = arith.mulf %7, %10 : vector<2x8x200xf32>
    %cst_8 = arith.constant dense<0.000000e+00> : vector<2x8xf32>
    %12 = vector.multi_reduction <add>, %11, %cst_8 [2] : vector<2x8x200xf32> to vector<2x8xf32>
    %c0_9 = arith.constant 0 : index
    %c0_10 = arith.constant 0 : index
    %13 = memref.load %arg6[%c0_9, %c0_10] : memref<1x1xf32, #tpu.memory_space<smem>>
    %14 = vector.broadcast %13 : f32 to vector<2x8xf32>
    %15 = arith.addf %12, %14 : vector<2x8xf32>
    %16 = math.exp %15 : vector<2x8xf32>
    %c0_11 = arith.constant 0 : index
    %c0_12 = arith.constant 0 : index
    %c0_13 = arith.constant 0 : index
    %17 = vector.load %arg2[%c0_11, %c0_12, %c0_13] : memref<2x1x8xf32, #tpu.memory_space<vmem>>, vector<2x1x8xf32>
    %18 = vector.shape_cast %17 : vector<2x1x8xf32> to vector<2x8xf32>
    %19 = arith.mulf %16, %18 : vector<2x8xf32>
    %cst_14 = arith.constant dense<0.000000e+00> : vector<2xf32>
    %20 = vector.multi_reduction <add>, %19, %cst_14 [1] : vector<2x8xf32> to vector<2xf32>
    %21 = vector.shape_cast %20 : vector<2xf32> to vector<2x1xf32>
    %cst_15 = arith.constant 9.99999993E-9 : f32
    %22 = vector.broadcast %cst_15 : f32 to vector<2x1xf32>
    %23 = arith.addf %21, %22 : vector<2x1xf32>
    %24 = vector.broadcast %23 : vector<2x1xf32> to vector<2x8xf32>
    %25 = arith.divf %19, %24 : vector<2x8xf32>
    %26 = vector.shape_cast %25 : vector<2x8xf32> to vector<2x8x1xf32>
    %27 = vector.broadcast %26 : vector<2x8x1xf32> to vector<2x8x32xf32>
    %28 = arith.mulf %0, %27 : vector<2x8x32xf32>
    %cst_16 = arith.constant dense<0.000000e+00> : vector<2x32xf32>
    %29 = vector.multi_reduction <add>, %28, %cst_16 [1] : vector<2x8x32xf32> to vector<2x32xf32>
    %c0_17 = arith.constant 0 : index
    %c0_18 = arith.constant 0 : index
    %30 = vector.load %arg7[%c0_17, %c0_18] : memref<2x32xf32, #tpu.memory_space<vmem>>, vector<2x32xf32>
    tpu.vector_store %arg7[%c0_17, %c0_18], %29 {strides = array<i32>} : memref<2x32xf32, #tpu.memory_space<vmem>>, vector<2x32xf32>,
    return
  }
  func.func @transform_0(%arg0: i32) -> (i32, i32, i32) {
    %c0_i32 = arith.constant 0 : i32
    %c0_i32_0 = arith.constant 0 : i32
    %c0_i32_1 = arith.constant 0 : i32
    return %arg0, %c0_i32, %c0_i32_0 : i32, i32, i32
  }
  func.func @transform_1(%arg0: i32) -> (i32, i32, i32) {
    %c0_i32 = arith.constant 0 : i32
    %c0_i32_0 = arith.constant 0 : i32
    %c0_i32_1 = arith.constant 0 : i32
    return %arg0, %c0_i32, %c0_i32_0 : i32, i32, i32
  }
  func.func @transform_2(%arg0: i32) -> (i32, i32) {
    %c0_i32 = arith.constant 0 : i32
    %c0_i32_0 = arith.constant 0 : i32
    %c0_i32_1 = arith.constant 0 : i32
    return %c0_i32, %c0_i32_0 : i32, i32
  }
  func.func @transform_3(%arg0: i32) -> (i32, i32) {
    %c0_i32 = arith.constant 0 : i32
    %c0_i32_0 = arith.constant 0 : i32
    %c0_i32_1 = arith.constant 0 : i32
    return %c0_i32, %c0_i32_0 : i32, i32
  }
  func.func @transform_4(%arg0: i32) -> (i32, i32) {
    %c0_i32 = arith.constant 0 : i32
    %c0_i32_0 = arith.constant 0 : i32
    %c0_i32_1 = arith.constant 0 : i32
    return %c0_i32, %c0_i32_0 : i32, i32
  }
  func.func @transform_5(%arg0: i32) -> (i32, i32) {
    %c0_i32 = arith.constant 0 : i32
    %c0_i32_0 = arith.constant 0 : i32
    %c0_i32_1 = arith.constant 0 : i32
    return %c0_i32, %c0_i32_0 : i32, i32
  }
  func.func @transform_6(%arg0: i32) -> (i32, i32) {
    %c0_i32 = arith.constant 0 : i32
    %c0_i32_0 = arith.constant 0 : i32
    return %arg0, %c0_i32 : i32, i32
  }
}

</mosaic_0001>

<llo_original>
// kernel: tpu_custom_call.1
$region0: #{tpu_custom_call.1}
  #allocation0 [shape = 'u32[]', space=smem, size = 0x4, offset = 0x4, fixed_abs, tag = 'smem constant byte address 0x4 - core index']
  #allocation1 [shape = 'u32[144,128]{1,0:T(1,128)}', space=vmem, size = 0x12000, scoped, tag = 'internal scratch']
  #allocation2 [shape = 'f32[1,1]{1,0:T(1,128)S(6)}', space=smem, size = 0x200, scoped, tag = 'scoped memory for tpu_custom_call.1']
  %s0 = inlined_call_operand.hbm [shape: f32[2,8,32], index: 0, kind: input, shape index: {}]
  %s1 = inlined_call_operand.vmem [shape: f32[2,1,8], index: 1, kind: input, shape index: {}]
  %s2 = inlined_call_operand.hbm [shape: f32[32,200], index: 2, kind: input, shape index: {}]
  %s3 = inlined_call_operand.vmem [shape: f32[1,200], index: 3, kind: input, shape index: {}]
  %s4 = inlined_call_operand.vmem [shape: f32[1,200], index: 4, kind: input, shape index: {}]
  %s5 = inlined_call_operand.<no memory space> [shape: f32[1,1], index: 5, kind: input, shape index: {}]
  %s6 = inlined_call_operand.hbm [shape: f32[2,32], index: 6, kind: output, shape index: {}]
  %s7 = sld [smem:[#allocation0]]
  $region42: #{tpu_custom_call.1} parent=0
    _
  %s9 = ssub.s32 1, %s7
  %s10 = scalar_select 0, %s9, %s7
  %11 = sst [smem:[#allocation2]] %s5
  $region1: #{tpu_custom_call.1} parent=0
    #allocation3 [shape = 'u8[8192]{0}', space=vmem, size = 0x2000, scoped, tag = 'input window, operand 0, single buffered']
    #allocation4 [shape = 's32[1]{0}', space=sflag, size = 0x4, scoped, tag = 'scoped memory for tpu_custom_call.1']
    #allocation5 [shape = 's32[1]{0}', space=sflag, size = 0x4, scoped, tag = 'scoped memory for tpu_custom_call.1']
    #allocation6 [shape = 'u8[32768]{0}', space=vmem, size = 0x8000, scoped, tag = 'input window, operand 2, single buffered']
    #allocation7 [shape = 's32[1]{0}', space=sflag, size = 0x4, scoped, tag = 'scoped memory for tpu_custom_call.1']
    #allocation8 [shape = 'u8[1024]{0}', space=vmem, size = 0x400, scoped, tag = 'output window, operand 0, single buffered']
    %12 = vsyncpa [#allocation4], 0
    %13 = vsyncpa [#allocation7], 0
    %14 = vsyncpa [#allocation5], 0
    // Predicated region
    $region2: #{tpu_custom_call.1} parent=1 // pred_check
      _
    $region3: #{tpu_custom_call.1} parent=1 // pred_check_branch
      %16 = sbr.rel (0) target = $region5
    $region4: #{tpu_custom_call.1} parent=1 // pred_region
      %s18 = ssub.s32 256, 256
      %19 = vsyncadd [#allocation4], %s18
      %s20 = sshll.u32 [#allocation3], 4
      %s21 = int_to_ptr.vmem [resolvable:$true] %s20
      %26 = dma.hbm_to_vmem [thread:$0]  %s0, 256, %s21, [#allocation4], 128, 128, 8
    $region5: #{tpu_custom_call.1} parent=1 // pred_fallthru
      _
    // Predicated region
    $region6: #{tpu_custom_call.1} parent=1 // pred_check
      _
    $region7: #{tpu_custom_call.1} parent=1 // pred_check_branch
      %28 = sbr.rel (0) target = $region9
    $region8: #{tpu_custom_call.1} parent=1 // pred_region
      _
    $region9: #{tpu_custom_call.1} parent=1 // pred_fallthru
      _
    // Predicated region
    $region10: #{tpu_custom_call.1} parent=1 // pred_check
      _
    $region11: #{tpu_custom_call.1} parent=1 // pred_check_branch
      %30 = sbr.rel (0) target = $region13
    $region12: #{tpu_custom_call.1} parent=1 // pred_region
      %s32 = ssub.s32 1024, 1024
      %33 = vsyncadd [#allocation7], %s32
      %s34 = sshll.u32 [#allocation6], 4
      %s35 = int_to_ptr.vmem [resolvable:$true] %s34
      %40 = dma.hbm_to_vmem [thread:$0]  %s2, 1024, %s35, [#allocation7], 256, 256, 16
    $region13: #{tpu_custom_call.1} parent=1 // pred_fallthru
      _
    // Predicated region
    $region14: #{tpu_custom_call.1} parent=1 // pred_check
      _
    $region15: #{tpu_custom_call.1} parent=1 // pred_check_branch
      %42 = sbr.rel (0) target = $region17
    $region16: #{tpu_custom_call.1} parent=1 // pred_region
      _
    $region17: #{tpu_custom_call.1} parent=1 // pred_fallthru
      _
    // Predicated region
    $region18: #{tpu_custom_call.1} parent=1 // pred_check
      _
    $region19: #{tpu_custom_call.1} parent=1 // pred_check_branch
      %44 = sbr.rel (0) target = $region21
    $region20: #{tpu_custom_call.1} parent=1 // pred_region
      _
    $region21: #{tpu_custom_call.1} parent=1 // pred_fallthru
      _
    // Predicated region
    $region22: #{tpu_custom_call.1} parent=1 // pred_check
      _
    $region23: #{tpu_custom_call.1} parent=1 // pred_check_branch
      %46 = sbr.rel (0) target = $region25
    $region24: #{tpu_custom_call.1} parent=1 // pred_region
      _
    $region25: #{tpu_custom_call.1} parent=1 // pred_fallthru
      _
    // Predicated region
    $region26: #{tpu_custom_call.1} parent=1 // pred_check
      _
    $region27: #{tpu_custom_call.1} parent=1 // pred_check_branch
      %48 = sbr.rel (0) target = $region29
    $region28: #{tpu_custom_call.1} parent=1 // pred_region
      %49 = dma.done [#allocation4], 256
    $region29: #{tpu_custom_call.1} parent=1 // pred_fallthru
      _
    // Predicated region
    $region30: #{tpu_custom_call.1} parent=1 // pred_check
      _
    $region31: #{tpu_custom_call.1} parent=1 // pred_check_branch
      %51 = sbr.rel (0) target = $region33
    $region32: #{tpu_custom_call.1} parent=1 // pred_region
      %52 = dma.done [#allocation7], 1024
    $region33: #{tpu_custom_call.1} parent=1 // pred_fallthru
      _
    %v53 = vld [vmem:[#allocation3] sm:$0xff]
    %v54 = vld [vmem:[#allocation3 + $0x8] sm:$0xff]
    %v55 = vld [vmem:[#allocation6] sm:$0xff]
    %v56 = vld [vmem:[#allocation6 + $0x8] sm:$0xff]
    %v57 = vld [vmem:[#allocation6 + $0x10] sm:$0xff]
    %v58 = vld [vmem:[#allocation6 + $0x18] sm:$0xff]
    %v59 = vld [vmem:[#allocation6 + $0x20] sm:$0xff]
    %v60 = vld [vmem:[#allocation6 + $0x28] sm:$0xff]
    %v61 = vld [vmem:[#allocation6 + $0x30] sm:$0xff]
    %v62 = vld [vmem:[#allocation6 + $0x38] sm:$0xff]
    %v63 = vld [vmem:[%s3] sm:$0x3]
    %v65 = vlaneseq
    %v66 = vshrl.u32 %v65, 7
    %v67 = vsub.s32 0, %v66
    %v68 = vrot.slane %v63, %v67
    %v69 = vlaneseq
    %v70 = vshrl.u32 %v69, 7
    %v71 = vsub.s32 1, %v70
    %v72 = vrot.slane %v63, %v71
    %vm75 = vcmask 261120
    %v77 = vsel %vm75, %v53, 0
    %v80 = vsel %vm75, %v54, 0
    %82 = vmatprep.subr.mxu0 %v56
    %83 = vmatpush1.msra.mxu0 %v55
    %84 = vmatprep.subr.mxu0 %v58
    %85 = vmatpush1.msra.mxu0 %v57
    %86 = vmatprep.subr.mxu0 %v60
    %87 = vmatpush1.msra.mxu0 %v59
    %88 = vmatprep.subr.mxu0 %v62
    %89 = vmatpush1.msra.mxu0 %v61
    %90 = vmatprep.subr.mxu0 0.0
    %91 = vmatpush1.msra.mxu0 0.0
    %92 = vmatprep.subr.mxu0 0.0
    %93 = vmatpush1.msra.mxu0 0.0
    %94 = vmatprep.subr.mxu0 0.0
    %95 = vmatpush1.msra.mxu0 0.0
    %96 = vmatprep.subr.mxu0 0.0
    %97 = vmatpush1.msra.mxu0 0.0
    %98 = vmatprep.subr.mxu0 0.0
    %99 = vmatpush1.msra.mxu0 0.0
    %100 = vmatprep.subr.mxu0 0.0
    %101 = vmatpush1.msra.mxu0 0.0
    %102 = vmatprep.subr.mxu0 0.0
    %103 = vmatpush1.msra.mxu0 0.0
    %104 = vmatprep.subr.mxu0 0.0
    %105 = vmatpush1.msra.mxu0 0.0
    %106 = vmatprep.subr.mxu0 0.0
    %107 = vmatpush1.msra.mxu0 0.0
    %108 = vmatprep.subr.mxu0 0.0
    %109 = vmatpush1.msra.mxu0 0.0
    %110 = vmatprep.subr.mxu0 0.0
    %111 = vmatpush1.msra.mxu0 0.0
    %112 = vmatprep.subr.mxu0 0.0
    %113 = vmatpush1.msra.mxu0 0.0
    %114 = vmatprep.subr.mxu0 0.0
    %115 = vmatpush1.msra.mxu0 0.0
    %116 = vmatprep.subr.mxu0 0.0
    %117 = vmatpush1.msra.mxu0 0.0
    %118 = vmatprep.subr.mxu0 0.0
    %119 = vmatpush1.msra.mxu0 0.0
    %120 = vmatprep.subr.mxu0 0.0
    %121 = vmatpush1.msra.mxu0 0.0
    %122 = vmatprep.subr.mxu0 0.0
    %123 = vmatpush1.msra.mxu0 0.0
    %124 = vmatprep.subr.mxu0 0.0
    %125 = vmatpush1.msra.mxu0 0.0
    %126 = vmatprep.subr.mxu0 0.0
    %127 = vmatpush1.msra.mxu0 0.0
    %128 = vmatprep.subr.mxu0 0.0
    %129 = vmatpush1.msra.mxu0 0.0
    %130 = vmatprep.subr.mxu0 0.0
    %131 = vmatpush1.msra.mxu0 0.0
    %132 = vmatprep.subr.mxu0 0.0
    %133 = vmatpush1.msra.mxu0 0.0
    %134 = vmatprep.subr.mxu0 0.0
    %135 = vmatpush1.msra.mxu0 0.0
    %136 = vmatprep.subr.mxu0 0.0
    %137 = vmatpush1.msra.mxu0 0.0
    %138 = vmatprep.subr.mxu0 0.0
    %139 = vmatpush1.msra.mxu0 0.0
    %140 = vmatprep.subr.mxu0 0.0
    %141 = vmatpush1.msra.mxu0 0.0
    %142 = vmatprep.subr.mxu0 0.0
    %143 = vmatpush1.msra.mxu0 0.0
    %144 = vmatprep.subr.mxu0 0.0
    %145 = vmatpush1.msra.mxu0 0.0
    %146 = vmatprep.mubr.f32.mxu0 0.0
    %147 = vmatmul.mubr.f32.gmra.mrb[0].mxu0 %v77
    %v148 = vpop.f32.mrb[0].mxu0
    %v149 = vadd.f32 %v68, %v148
    %v150 = vpop.f32.mrb[0].mxu0
    %v151 = vadd.f32 %v72, %v150
    %152 = vmatprep.mubr.f32.mxu0 0.0
    %153 = vmatmul.mubr.f32.gmra.mrb[0].mxu0 %v80
    %v154 = vpop.f32.mrb[0].mxu0
    %v155 = vadd.f32 %v68, %v154
    %v156 = vpop.f32.mrb[0].mxu0
    %v157 = vadd.f32 %v72, %v156
    %158 = vdwg.mxu0
    %v159 = vtanh.pop %v149
    %v160 = vtanh.pop %v151
    %v161 = vtanh.pop %v155
    %v162 = vtanh.pop %v157
    %v163 = vld [vmem:[%s4] sm:$0x3]
    %v165 = vlaneseq
    %v166 = vshrl.u32 %v165, 7
    %v167 = vsub.s32 0, %v166
    %v168 = vrot.slane %v163, %v167
    %v169 = vlaneseq
    %v170 = vshrl.u32 %v169, 7
    %v171 = vsub.s32 1, %v170
    %v172 = vrot.slane %v163, %v171
    %v175 = vmul.f32 %v159, %v168
    %v176 = vmul.f32 %v160, %v172
    %v177 = vmul.f32 %v161, %v168
    %v178 = vmul.f32 %v162, %v172
    %vm179 = vcmask 588800
    %v180 = vsel %vm179, %v176, 0.0
    %v181 = vadd.f32 %v175, %v180
    %182 = vadd.xlane.f32.xlu0 %v181
    %v183 = vpop.xlane.xlu0 %182
    %v184 = vsel %vm179, %v178, 0.0
    %v185 = vadd.f32 %v177, %v184
    %186 = vadd.xlane.f32.xlu0 %v185
    %v187 = vpop.xlane.xlu0 %186
    %s188 = sld [smem:[#allocation2]]
    %v189 = vstv %s188
    %v190 = vadd.f32 %v183, %v189
    %v191 = vadd.f32 %v187, %v189
    %v192 = vmul.f32 %v190, 1.442695
    %v193 = vpow.pop %v192
    %v194 = vmul.f32 %v191, 1.442695
    %v195 = vpow.pop %v194
    %v196 = vld [vmem:[%s1] sm:$0x1]
    %v197 = vld [vmem:[%s1 + $0x1] sm:$0x1]
    %v200 = vlaneseq
    %v201 = vshrl.u32 %v200, 7
    %v202 = vsub.s32 0, %v201
    %v203 = vrot.slane %v196, %v202
    %v204 = vlaneseq
    %v205 = vshrl.u32 %v204, 7
    %v206 = vsub.s32 0, %v205
    %v207 = vrot.slane %v197, %v206
    %209 = vbcast.lane.b32.xlu0 %v203, 256
    %v210 = vpop.permute.xlu0 %209
    %212 = vbcast.lane.b32.xlu0 %v207, 256
    %v213 = vpop.permute.xlu0 %212
    %v216 = vmul.f32 %v193, %v210
    %v217 = vmul.f32 %v195, %v213
    %220 = vset.pattern.permute.xlu0 0
    %221 = vperm.xlu0 %220, %v216
    %v222 = vpop.permute.xlu0 %221
    %223 = vset.pattern.permute.xlu0 0
    %224 = vperm.xlu0 %223, %v217
    %v225 = vpop.permute.xlu0 %224
    %v226 = vlaneseq
    %v227 = vand.u32 %v226, 127
    %v228 = vlaneseq
    %v229 = vshrl.u32 %v228, 7
    %v230 = vsub.s32 %v227, %v229
    %v231 = vrot.slane %v222, %v230
    %v232 = vlaneseq
    %v233 = vshrl.u32 %v232, 7
    %v234 = vsub.s32 %v227, %v233
    %v235 = vrot.slane %v225, %v234
    %vm236 = vcmask 1041409
    %v237 = vsel %vm236, %v235, %v231
    %vm239 = vcmask 58368
    %v240 = vsel %vm239, %v237, 0.0
    %241 = vadd.xlane.f32.xlu0 %v240
    %v242 = vpop.xlane.xlu0 %241
    %v243 = vadd.f32 %v242, 1e-08
    %v245 = vlaneseq
    %v246 = vshrl.u32 %v245, 7
    %v247 = vsub.s32 0, %v246
    %v248 = vrot.slane %v243, %v247
    %v249 = vlaneseq
    %v250 = vshrl.u32 %v249, 7
    %v251 = vsub.s32 1, %v250
    %v252 = vrot.slane %v243, %v251
    %v255 = vrcp.pop %v248
    %v256 = vmul.f32 %v216, %v255
    %v257 = vrcp.pop %v252
    %v258 = vmul.f32 %v217, %v257
    %260 = vset.pattern.permute.xlu0 0
    %261 = vperm.xlu0 %260, %v256
    %v262 = vpop.permute.xlu0 %261
    %265 = vset.pattern.permute.xlu0 0
    %266 = vperm.xlu0 %265, %v258
    %v267 = vpop.permute.xlu0 %266
    %v269 = vmul.f32 %v53, %v262
    %v270 = vmul.f32 %v54, %v267
    %v271 = vsel %vm75, %v269, 0.0
    %v272 = vrot.slane %v271, 4
    %v273 = vadd.f32 %v271, %v272
    %v274 = vrot.slane %v273, 2
    %v275 = vadd.f32 %v273, %v274
    %v276 = vrot.slane %v275, 1
    %v277 = vadd.f32 %v275, %v276
    %v278 = vsel %vm75, %v270, 0.0
    %v279 = vrot.slane %v278, 4
    %v280 = vadd.f32 %v278, %v279
    %v281 = vrot.slane %v280, 2
    %v282 = vadd.f32 %v280, %v281
    %v283 = vrot.slane %v282, 1
    %v284 = vadd.f32 %v282, %v283
    %v287 = vsel %vm236, %v284, %v277
    %vm289 = vcmask 254976
    %290 = vst.msk [vmem:[#allocation8] sm:$0x3] %vm289, %v287
    // Predicated region
    $region34: #{tpu_custom_call.1} parent=1 // pred_check
      _
    $region35: #{tpu_custom_call.1} parent=1 // pred_check_branch
      %292 = sbr.rel (0) target = $region37
    $region36: #{tpu_custom_call.1} parent=1 // pred_region
      %s294 = ssub.s32 32, 32
      %295 = vsyncadd [#allocation5], %s294
      %s297 = sshll.u32 [#allocation8], 4
      %s298 = int_to_ptr.vmem [resolvable:$true] %s297
      %300 = dma.vmem_to_hbm [thread:$0]  %s298, 32, %s6, [#allocation5]
    $region37: #{tpu_custom_call.1} parent=1 // pred_fallthru
      _
    // Predicated region
    $region38: #{tpu_custom_call.1} parent=1 // pred_check
      _
    $region39: #{tpu_custom_call.1} parent=1 // pred_check_branch
      %302 = sbr.rel (0) target = $region41
    $region40: #{tpu_custom_call.1} parent=1 // pred_region
      %303 = dma.done [#allocation5], 32
    $region41: #{tpu_custom_call.1} parent=1 // pred_fallthru
      _
    %304 = vsyncpa [#allocation4], 1
    %305 = vsyncpa [#allocation7], 1
    %306 = vsyncpa [#allocation5], 1

</llo_original>
